<compile_context>
chip_gen: v6e
topology: v6e:2x2x1
jax: 0.10.0
libtpu: 0.0.40
codegen_flags: <defaults>
</compile_context>

<pallas_src>
import functools

import jax
import jax.numpy as jnp
from jax.experimental import pallas as pl
from jax.experimental.pallas import tpu as pltpu

LANE = 128
SUBLANE = 8
MAX_TILE_ROWS = 1024   # 1024 x 128 x f32 = 512 KiB per logit block


def _focal_sum_kernel(cw_ref, logit_ref, target_ref, out_ref, acc_ref,
                      *, gamma, n_valid, tile_rows):
    i = pl.program_id(0)

    @pl.when(i == 0)
    def _():
        acc_ref[...] = jnp.zeros_like(acc_ref)

    x = logit_ref[...].astype(jnp.float32)
    t = target_ref[...].astype(jnp.float32)   # values {0., 1.}

    # prob of the selected class: sigmoid(x) if t==1 else 1 - sigmoid(x),
    # fused as sigmoid((2t-1)*x) -> single sigmoid path, fewer VALU ops.
    z = (2.0 * t - 1.0) * x
    prob = jnp.clip(jax.nn.sigmoid(z), 1e-8, 1.0 - 1e-8)

    one_m = 1.0 - prob
    if gamma == 2.0:
        focus = one_m * one_m                 # avoid pow -> exp(g*log(.)) EUP chain
    elif gamma == 1.0:
        focus = one_m
    else:
        focus = one_m ** gamma
    focus = jnp.clip(focus, 0.0, 2.0)

    # class_weight gathered by binary target: w0 + t*(w1 - w0)
    w0 = cw_ref[0]
    w1 = cw_ref[1]
    cw = w0 + t * (w1 - w0)

    loss = -cw * focus * jnp.log(prob)

    # Tail mask computed in-kernel (only the final tile is ever padded).
    row_ids = jax.lax.broadcasted_iota(jnp.int32, (tile_rows, LANE), 0)
    lane_ids = jax.lax.broadcasted_iota(jnp.int32, (tile_rows, LANE), 1)
    idx = i * (tile_rows * LANE) + row_ids * LANE + lane_ids
    loss = jnp.where(idx < n_valid, loss, 0.0)

    # Vreg-shaped partial accumulation: VPU-only adds per step.
    acc_ref[...] += jnp.sum(
        loss.reshape(tile_rows // SUBLANE, SUBLANE, LANE), axis=0)

    @pl.when(i == pl.num_programs(0) - 1)
    def _():
        total = jnp.sum(acc_ref[...], keepdims=True)        # (1, 1)
        out_ref[...] = total / jnp.float32(n_valid)


def robust_focal_loss_2d(logit, target, class_weight=None, gamma=2.0,
                         size_average=True):
    """Sigmoid-type RobustFocalLoss2d forward.

    logit: any shape (e.g. NCHW); target: same number of elements, values {0,1}.
    Returns scalar mean loss (size_average=True).
    """
    assert size_average, "only size_average=True is implemented in the kernel"

    if class_weight is None:
        class_weight = [1.0, 1.0]
    cw = jnp.asarray(class_weight, jnp.float32)
    assert cw.shape == (2,), "sigmoid path expects exactly two class weights"

    n = int(logit.size)
    x = logit.reshape(-1)                       # keep original dtype (bf16 ok)
    t = target.reshape(-1).astype(jnp.int8)     # 1 byte/elem over HBM

    # Row layout: pad flat length to (rows_p, 128) with rows_p a multiple of
    # the row tile; cap the tile at MAX_TILE_ROWS, shrink it for tiny inputs.
    rows = -(-n // LANE)
    rows8 = -(-rows // SUBLANE) * SUBLANE
    tile_rows = min(MAX_TILE_ROWS, rows8)
    rows_p = -(-rows8 // tile_rows) * tile_rows
    total = rows_p * LANE
    pad = total - n

    x = jnp.pad(x, (0, pad)).reshape(rows_p, LANE)
    t = jnp.pad(t, (0, pad)).reshape(rows_p, LANE)

    grid = (rows_p // tile_rows,)

    kernel = functools.partial(_focal_sum_kernel, gamma=float(gamma),
                               n_valid=n, tile_rows=tile_rows)

    cost = pl.CostEstimate(
        flops=12 * n,
        transcendentals=2 * n,                                  # sigmoid + log
        bytes_accessed=n * (x.dtype.itemsize + 1) + 4,
    )

    out = pl.pallas_call(
        kernel,
        out_shape=jax.ShapeDtypeStruct((1, 1), jnp.float32),
        grid_spec=pltpu.PrefetchScalarGridSpec(
            num_scalar_prefetch=0,
            grid=grid,
            in_specs=[
                pl.BlockSpec(memory_space=pltpu.SMEM),               # class_weight (2,)
                pl.BlockSpec((tile_rows, LANE), lambda i: (i, 0)),   # logits
                pl.BlockSpec((tile_rows, LANE), lambda i: (i, 0)),   # targets (int8)
            ],
            out_specs=pl.BlockSpec((1, 1), lambda i: (0, 0)),
            scratch_shapes=[pltpu.VMEM((SUBLANE, LANE), jnp.float32)],
        ),
        compiler_params=pltpu.CompilerParams(
            dimension_semantics=("arbitrary",)),
        cost_estimate=cost,
    )(cw, x, t)
    return out[0, 0]


def _reference_loss(logit, target, class_weight=None, gamma=2.0):
    """Pure-JAX reference mirroring the PyTorch forward (sigmoid path)."""
    if class_weight is None:
        class_weight = [1.0, 1.0]
    cw_tbl = jnp.asarray(class_weight, jnp.float32)
    t = target.reshape(-1).astype(jnp.int32)
    p = jax.nn.sigmoid(logit.reshape(-1).astype(jnp.float32))
    prob2 = jnp.stack([1.0 - p, p], axis=1)
    select = jax.nn.one_hot(t, 2, dtype=jnp.float32)
    cw = cw_tbl[t]
    prob = jnp.clip(jnp.sum(prob2 * select, axis=1), 1e-8, 1.0 - 1e-8)
    focus = jnp.clip((1.0 - prob) ** gamma, 0.0, 2.0)
    batch_loss = -cw * focus * jnp.log(prob)
    return jnp.mean(batch_loss)


if __name__ == "__main__":
    key = jax.random.PRNGKey(0)
    k1, k2, k3, k4 = jax.random.split(key, 4)

    # Small NCHW case (single tile, single grid step).
    B, C, H, W = 2, 4, 16, 16
    logit = jax.random.normal(k1, (B, C, H, W), dtype=jnp.float32)
    target = jax.random.bernoulli(k2, 0.3, (B, C, H, W)).astype(jnp.int32)

    loss = robust_focal_loss_2d(logit, target)
    jax.block_until_ready(loss)
    ref = _reference_loss(logit, target)
    assert jnp.allclose(loss, ref, rtol=1e-5, atol=1e-6), (loss, ref)

    # Larger ragged case: multi-step grid, in-kernel tail mask, class weights.
    B2, C2, H2, W2 = 2, 4, 150, 150   # 180000 elems -> 2 grid steps of 1024 rows
    logit2 = jax.random.normal(k3, (B2, C2, H2, W2), dtype=jnp.float32)
    target2 = jax.random.bernoulli(k4, 0.5, (B2, C2, H2, W2)).astype(jnp.int32)

    loss2 = robust_focal_loss_2d(logit2, target2, class_weight=[0.25, 0.75])
    jax.block_until_ready(loss2)
    ref2 = _reference_loss(logit2, target2, class_weight=[0.25, 0.75])
    assert jnp.allclose(loss2, ref2, rtol=1e-4, atol=1e-6), (loss2, ref2)

    print("KERNEL_OK")
</pallas_src>

<mosaic_0001>
module attributes {stable_mosaic.version = 11 : i64} {
  func.func @_focal_sum_kernel(%arg0: i32, %arg1: memref<2xf32, #tpu.memory_space<smem>>, %arg2: memref<16x128xf32, #tpu.memory_space<vmem>>, %arg3: memref<16x128xi8, #tpu.memory_space<vmem>>, %arg4: memref<1x1xf32, #tpu.memory_space<vmem>>, %arg5: memref<8x128xf32, #tpu.memory_space<vmem>>) attributes {dimension_semantics = [#tpu.dimension_semantics<arbitrary>], iteration_bounds = array<i64: 1>, scalar_prefetch = 0 : i64, scratch_operands = 1 : i64, tpu.core_type = #tpu.core_type<tc>, window_params = [{transform_indices = @transform_0, window_bounds = array<i64: 2>}, {transform_indices = @transform_1, window_bounds = array<i64: 16, 128>}, {transform_indices = @transform_2, window_bounds = array<i64: 16, 128>}, {pipeline_mode = #tpu.pipeline_mode<synchronous>, transform_indices = @transform_3, window_bounds = array<i64: 1, 1>}]} {
    %c0_i32 = arith.constant 0 : i32
    %0 = arith.cmpi eq, %arg0, %c0_i32 : i32
    %1 = arith.extui %0 : i1 to i32
    %c0_i32_0 = arith.constant 0 : i32
    %2 = arith.cmpi ne, %1, %c0_i32_0 : i32
    scf.if %2 {
      %cst_22 = arith.constant 0.000000e+00 : f32
      %59 = vector.broadcast %cst_22 : f32 to vector<8x128xf32>
      %c0_23 = arith.constant 0 : index
      %c0_24 = arith.constant 0 : index
      %60 = vector.load %arg5[%c0_23, %c0_24] : memref<8x128xf32, #tpu.memory_space<vmem>>, vector<8x128xf32>
      tpu.vector_store %arg5[%c0_23, %c0_24], %59 {strides = array<i32>} : memref<8x128xf32, #tpu.memory_space<vmem>>, vector<8x128xf32>,
    } else {
    }
    %c0 = arith.constant 0 : index
    %c0_1 = arith.constant 0 : index
    %3 = vector.load %arg2[%c0, %c0_1] : memref<16x128xf32, #tpu.memory_space<vmem>>, vector<16x128xf32>
    %c0_2 = arith.constant 0 : index
    %c0_3 = arith.constant 0 : index
    %4 = vector.load %arg3[%c0_2, %c0_3] : memref<16x128xi8, #tpu.memory_space<vmem>>, vector<16x128xi8>
    %5 = arith.sitofp %4 : vector<16x128xi8> to vector<16x128xf32>
    %cst = arith.constant 2.000000e+00 : f32
    %6 = vector.broadcast %cst : f32 to vector<16x128xf32>
    %7 = arith.mulf %6, %5 : vector<16x128xf32>
    %cst_4 = arith.constant 1.000000e+00 : f32
    %8 = vector.broadcast %cst_4 : f32 to vector<16x128xf32>
    %9 = arith.subf %7, %8 : vector<16x128xf32>
    %10 = arith.mulf %9, %3 : vector<16x128xf32>
    %11 = arith.negf %10 : vector<16x128xf32>
    %12 = math.exp %11 : vector<16x128xf32>
    %cst_5 = arith.constant 1.000000e+00 : f32
    %13 = vector.broadcast %cst_5 : f32 to vector<16x128xf32>
    %14 = arith.addf %13, %12 : vector<16x128xf32>
    %15 = arith.divf %13, %14 : vector<16x128xf32>
    %cst_6 = arith.constant 9.99999993E-9 : f32
    %cst_7 = arith.constant 1.000000e+00 : f32
    %16 = vector.broadcast %cst_6 : f32 to vector<16x128xf32>
    %17 = arith.maximumf %16, %15 : vector<16x128xf32>
    %18 = vector.broadcast %cst_7 : f32 to vector<16x128xf32>
    %19 = arith.minimumf %18, %17 : vector<16x128xf32>
    %cst_8 = arith.constant 1.000000e+00 : f32
    %20 = vector.broadcast %cst_8 : f32 to vector<16x128xf32>
    %21 = arith.subf %20, %19 : vector<16x128xf32>
    %22 = arith.mulf %21, %21 : vector<16x128xf32>
    %cst_9 = arith.constant 0.000000e+00 : f32
    %cst_10 = arith.constant 2.000000e+00 : f32
    %23 = vector.broadcast %cst_9 : f32 to vector<16x128xf32>
    %24 = arith.maximumf %23, %22 : vector<16x128xf32>
    %25 = vector.broadcast %cst_10 : f32 to vector<16x128xf32>
    %26 = arith.minimumf %25, %24 : vector<16x128xf32>
    %c0_11 = arith.constant 0 : index
    %27 = memref.load %arg1[%c0_11] : memref<2xf32, #tpu.memory_space<smem>>
    %c1 = arith.constant 1 : index
    %28 = memref.load %arg1[%c1] : memref<2xf32, #tpu.memory_space<smem>>
    %29 = arith.subf %28, %27 : f32
    %30 = vector.broadcast %29 : f32 to vector<16x128xf32>
    %31 = arith.mulf %5, %30 : vector<16x128xf32>
    %32 = vector.broadcast %27 : f32 to vector<16x128xf32>
    %33 = arith.addf %32, %31 : vector<16x128xf32>
    %cst_12 = arith.constant 0.000000e+00 : f32
    %34 = vector.broadcast %cst_12 : f32 to vector<16x128xf32>
    %35 = arith.subf %34, %33 : vector<16x128xf32>
    %36 = arith.mulf %35, %26 : vector<16x128xf32>
    %37 = math.log %19 : vector<16x128xf32>
    %38 = arith.mulf %36, %37 : vector<16x128xf32>
    %39 = tpu.iota {dimensions = array<i32: 0>} : vector<16x128xi32>
    %40 = tpu.iota {dimensions = array<i32: 1>} : vector<16x128xi32>
    %c2048_i32 = arith.constant 2048 : i32
    %41 = arith.muli %arg0, %c2048_i32 : i32
    %c128_i32 = arith.constant 128 : i32
    %42 = vector.broadcast %c128_i32 : i32 to vector<16x128xi32>
    %43 = arith.muli %39, %42 : vector<16x128xi32>
    %44 = vector.broadcast %41 : i32 to vector<16x128xi32>
    %45 = arith.addi %44, %43 : vector<16x128xi32>
    %46 = arith.addi %45, %40 : vector<16x128xi32>
    %c2048_i32_13 = arith.constant 2048 : i32
    %47 = vector.broadcast %c2048_i32_13 : i32 to vector<16x128xi32>
    %48 = arith.cmpi slt, %46, %47 : vector<16x128xi32>
    %cst_14 = arith.constant 0.000000e+00 : f32
    %49 = vector.broadcast %cst_14 : f32 to vector<16x128xf32>
    %50 = arith.select %48, %38, %49 : vector<16x128xi1>, vector<16x128xf32>
    %c0_15 = arith.constant 0 : index
    %c0_16 = arith.constant 0 : index
    %51 = vector.load %arg5[%c0_15, %c0_16] : memref<8x128xf32, #tpu.memory_space<vmem>>, vector<8x128xf32>
    %52 = vector.shape_cast %50 : vector<16x128xf32> to vector<2x8x128xf32>
    %cst_17 = arith.constant dense<0.000000e+00> : vector<8x128xf32>
    %53 = vector.multi_reduction <add>, %52, %cst_17 [0] : vector<2x8x128xf32> to vector<8x128xf32>
    %54 = arith.addf %51, %53 : vector<8x128xf32>
    %c0_18 = arith.constant 0 : index
    %c0_19 = arith.constant 0 : index
    %55 = vector.load %arg5[%c0_18, %c0_19] : memref<8x128xf32, #tpu.memory_space<vmem>>, vector<8x128xf32>
    tpu.vector_store %arg5[%c0_18, %c0_19], %54 {strides = array<i32>} : memref<8x128xf32, #tpu.memory_space<vmem>>, vector<8x128xf32>,
    %c0_i32_20 = arith.constant 0 : i32
    %56 = arith.cmpi eq, %arg0, %c0_i32_20 : i32
    %57 = arith.extui %56 : i1 to i32
    %c0_i32_21 = arith.constant 0 : i32
    %58 = arith.cmpi ne, %57, %c0_i32_21 : i32
    scf.if %58 {
      %c0_22 = arith.constant 0 : index
      %c0_23 = arith.constant 0 : index
      %59 = vector.load %arg5[%c0_22, %c0_23] : memref<8x128xf32, #tpu.memory_space<vmem>>, vector<8x128xf32>
      %60 = vector.shape_cast %59 : vector<8x128xf32> to vector<1x8x128xf32>
      %cst_24 = arith.constant dense<0.000000e+00> : vector<1xf32>
      %61 = vector.multi_reduction <add>, %60, %cst_24 [1, 2] : vector<1x8x128xf32> to vector<1xf32>
      %62 = vector.shape_cast %61 : vector<1xf32> to vector<1x1x1xf32>
      %63 = vector.extract %62[0, 0, 0] : f32 from vector<1x1x1xf32>
      %64 = vector.broadcast %63 : f32 to vector<1x1xf32>
      %cst_25 = arith.constant 2.048000e+03 : f32
      %65 = vector.broadcast %cst_25 : f32 to vector<1x1xf32>
      %66 = arith.divf %64, %65 : vector<1x1xf32>
      %c0_26 = arith.constant 0 : index
      %c0_27 = arith.constant 0 : index
      %67 = vector.load %arg4[%c0_26, %c0_27] : memref<1x1xf32, #tpu.memory_space<vmem>>, vector<1x1xf32>
      tpu.vector_store %arg4[%c0_26, %c0_27], %66 {strides = array<i32>} : memref<1x1xf32, #tpu.memory_space<vmem>>, vector<1x1xf32>,
    } else {
    }
    return
  }
  func.func @transform_0(%arg0: i32) -> i32 {
    %c0_i32 = arith.constant 0 : i32
    %c0_i32_0 = arith.constant 0 : i32
    return %c0_i32 : i32
  }
  func.func @transform_1(%arg0: i32) -> (i32, i32) {
    %c0_i32 = arith.constant 0 : i32
    %c0_i32_0 = arith.constant 0 : i32
    return %arg0, %c0_i32 : i32, i32
  }
  func.func @transform_2(%arg0: i32) -> (i32, i32) {
    %c0_i32 = arith.constant 0 : i32
    %c0_i32_0 = arith.constant 0 : i32
    return %arg0, %c0_i32 : i32, i32
  }
  func.func @transform_3(%arg0: i32) -> (i32, i32) {
    %c0_i32 = arith.constant 0 : i32
    %c0_i32_0 = arith.constant 0 : i32
    %c0_i32_1 = arith.constant 0 : i32
    return %c0_i32, %c0_i32_0 : i32, i32
  }
}

</mosaic_0001>

<llo_original>
// kernel: tpu_custom_call.1
$region0: #{tpu_custom_call.1}
  #allocation0 [shape = 'u32[]', space=smem, size = 0x4, offset = 0x4, fixed_abs, tag = 'smem constant byte address 0x4 - core index']
  #allocation1 [shape = 'u32[144,128]{1,0:T(1,128)}', space=vmem, size = 0x12000, scoped, tag = 'internal scratch']
  #allocation2 [shape = 'f32[8,128]{1,0:T(8,128)}', space=vmem, size = 0x1000, scoped, tag = 'scratch operand']
  %s0 = inlined_call_operand.hbm [shape: f32[2], index: 0, kind: input, shape index: {}]
  %s1 = inlined_call_operand.hbm [shape: f32[16,128], index: 1, kind: input, shape index: {}]
  %s2 = inlined_call_operand.hbm [shape: s8[16,128], index: 2, kind: input, shape index: {}]
  %s3 = inlined_call_operand.hbm [shape: f32[1,1], index: 3, kind: output, shape index: {}]
  %s4 = sld [smem:[#allocation0]]
  $region42: #{tpu_custom_call.1} parent=0
    _
  %s6 = ssub.s32 1, %s4
  %s7 = scalar_select 0, %s6, %s4
  $region1: #{tpu_custom_call.1} parent=0
    #allocation3 [shape = 'u8[512]{0}', space=smem, size = 0x200, scoped, tag = 'input window, operand 0, single buffered']
    #allocation4 [shape = 's32[1]{0}', space=sflag, size = 0x4, scoped, tag = 'scoped memory for tpu_custom_call.1']
    #allocation5 [shape = 's32[1]{0}', space=sflag, size = 0x4, scoped, tag = 'scoped memory for tpu_custom_call.1']
    #allocation6 [shape = 's32[1]{0}', space=sflag, size = 0x4, scoped, tag = 'scoped memory for tpu_custom_call.1']
    #allocation7 [shape = 'u8[8192]{0}', space=vmem, size = 0x2000, scoped, tag = 'input window, operand 1, single buffered']
    #allocation8 [shape = 'u8[2048]{0}', space=vmem, size = 0x800, scoped, tag = 'input window, operand 2, single buffered']
    #allocation9 [shape = 's32[1]{0}', space=sflag, size = 0x4, scoped, tag = 'scoped memory for tpu_custom_call.1']
    #allocation10 [shape = 'u8[512]{0}', space=vmem, size = 0x400, scoped, tag = 'output window, operand 0, single buffered']
    %8 = vsyncpa [#allocation6], 0
    %9 = vsyncpa [#allocation4], 0
    %10 = vsyncpa [#allocation9], 0
    %11 = vsyncpa [#allocation5], 0
    // Predicated region
    $region2: #{tpu_custom_call.1} parent=1 // pred_check
      _
    $region3: #{tpu_custom_call.1} parent=1 // pred_check_branch
      %13 = sbr.rel (0) target = $region5
    $region4: #{tpu_custom_call.1} parent=1 // pred_region
      %s15 = ssub.s32 16, 16
      %16 = vsyncadd [#allocation6], %s15
      %19 = dma.hbm_to_smem %s0, 16, [#allocation3], [#allocation6]
    $region5: #{tpu_custom_call.1} parent=1 // pred_fallthru
      _
    // Predicated region
    $region6: #{tpu_custom_call.1} parent=1 // pred_check
      _
    $region7: #{tpu_custom_call.1} parent=1 // pred_check_branch
      %21 = sbr.rel (0) target = $region9
    $region8: #{tpu_custom_call.1} parent=1 // pred_region
      %s23 = ssub.s32 256, 256
      %24 = vsyncadd [#allocation4], %s23
      %s25 = sshll.u32 [#allocation7], 4
      %s26 = int_to_ptr.vmem [resolvable:$true] %s25
      %31 = dma.hbm_to_vmem [thread:$0]  %s1, 256, %s26, [#allocation4], 128, 128, 8
    $region9: #{tpu_custom_call.1} parent=1 // pred_fallthru
      _
    // Predicated region
    $region10: #{tpu_custom_call.1} parent=1 // pred_check
      _
    $region11: #{tpu_custom_call.1} parent=1 // pred_check_branch
      %33 = sbr.rel (0) target = $region13
    $region12: #{tpu_custom_call.1} parent=1 // pred_region
      %s35 = ssub.s32 64, 64
      %36 = vsyncadd [#allocation9], %s35
      %s37 = sshll.u32 [#allocation8], 4
      %s38 = int_to_ptr.vmem [resolvable:$true] %s37
      %43 = dma.hbm_to_vmem [thread:$0]  %s2, 64, %s38, [#allocation9], 32, 32, 2
    $region13: #{tpu_custom_call.1} parent=1 // pred_fallthru
      _
    // Predicated region
    $region14: #{tpu_custom_call.1} parent=1 // pred_check
      _
    $region15: #{tpu_custom_call.1} parent=1 // pred_check_branch
      %45 = sbr.rel (0) target = $region17
    $region16: #{tpu_custom_call.1} parent=1 // pred_region
      %46 = dma.done [#allocation6], 16
    $region17: #{tpu_custom_call.1} parent=1 // pred_fallthru
      _
    // Predicated region
    $region18: #{tpu_custom_call.1} parent=1 // pred_check
      _
    $region19: #{tpu_custom_call.1} parent=1 // pred_check_branch
      %48 = sbr.rel (0) target = $region21
    $region20: #{tpu_custom_call.1} parent=1 // pred_region
      %49 = dma.done [#allocation4], 256
    $region21: #{tpu_custom_call.1} parent=1 // pred_fallthru
      _
    // Predicated region
    $region22: #{tpu_custom_call.1} parent=1 // pred_check
      _
    $region23: #{tpu_custom_call.1} parent=1 // pred_check_branch
      %51 = sbr.rel (0) target = $region25
    $region24: #{tpu_custom_call.1} parent=1 // pred_region
      %52 = dma.done [#allocation9], 64
    $region25: #{tpu_custom_call.1} parent=1 // pred_fallthru
      _
    %53 = sfence
    %p54 = scmp.eq.s32.totalorder 0, 0
    // Predicated region
    $region26: #{tpu_custom_call.1} parent=1 // pred_check
      %p55 = pneg %p54
    $region27: #{tpu_custom_call.1} parent=1 // pred_check_branch
      %57 = sbr.rel (%p55) target = $region29
    $region28: #{tpu_custom_call.1} parent=1 // pred_region
      %58 = vst [vmem:[#allocation2] sm:$0xff] 0.0
    $region29: #{tpu_custom_call.1} parent=1 // pred_fallthru
      _
    %v59 = vld [vmem:[#allocation7] sm:$0xff]
    %v60 = vld [vmem:[#allocation7 + $0x8] sm:$0xff]
    %v61 = vld [vmem:[#allocation8] sm:$0x3]
    %v62 = vld [vmem:[#allocation8 + $0x2] sm:$0x3]
    %v63 = vunpack.c.0.s8 %v61
    %v64 = vunpack.c.0.s8 %v62
    %v65 = vcvt.s32.f32 %v63
    %v66 = vcvt.s32.f32 %v64
    %v67 = vmul.f32 %v65, 2.0
    %v68 = vmul.f32 %v66, 2.0
    %v69 = vsub.f32 %v67, 1.0
    %v70 = vsub.f32 %v68, 1.0
    %v71 = vmul.f32 %v69, %v59
    %v72 = vmul.f32 %v70, %v60
    %v73 = vxor.u32 %v71, 2147483648
    %v74 = vxor.u32 %v72, 2147483648
    %v75 = vmul.f32 %v73, 1.442695
    %v76 = vpow.pop %v75
    %v77 = vmul.f32 %v74, 1.442695
    %v78 = vpow.pop %v77
    %v79 = vadd.f32 %v76, 1.0
    %v80 = vadd.f32 %v78, 1.0
    %v81 = vrcp.pop %v79
    %v82 = vmul.f32 1.0, %v81
    %v83 = vrcp.pop %v80
    %v84 = vmul.f32 1.0, %v83
    %v85 = vmax.f32 %v82, 1e-08
    %v86 = vmax.f32 %v84, 1e-08
    %v87 = vmin.f32 %v85, 1.0
    %v88 = vmin.f32 %v86, 1.0
    %v89 = vsub.f32 1.0, %v87
    %v90 = vsub.f32 1.0, %v88
    %v91 = vmul.f32 %v89, %v89
    %v92 = vmul.f32 %v90, %v90
    %v93 = vmax.f32 %v91, 0.0
    %v94 = vmax.f32 %v92, 0.0
    %v95 = vmin.f32 %v93, 2.0
    %v96 = vmin.f32 %v94, 2.0
    %s97 = sld [smem:[#allocation3]]
    %s98 = sld [smem:[#allocation3 + $0x1]]
    %s99 = ssub.f32 %s98, %s97
    %v100 = vstv %s99
    %v101 = vmul.f32 %v65, %v100
    %v102 = vmul.f32 %v66, %v100
    %v103 = vstv %s97
    %v104 = vadd.f32 %v103, %v101
    %v105 = vadd.f32 %v103, %v102
    %v106 = vsub.f32 0.0, %v104
    %v107 = vsub.f32 0.0, %v105
    %v108 = vmul.f32 %v106, %v95
    %v109 = vmul.f32 %v107, %v96
    %v110 = vlog2.pop %v87
    %v111 = vmul.f32 %v110, 0.6931472
    %v112 = vlog2.pop %v88
    %v113 = vmul.f32 %v112, 0.6931472
    %v114 = vmul.f32 %v108, %v111
    %v115 = vmul.f32 %v109, %v113
    %v116 = vlaneseq
    %v117 = vshrl.u32 %v116, 7
    %v118 = vadd.s32 %v117, 8
    %v119 = vlaneseq
    %v120 = vand.u32 %v119, 127
    %s121 = smul.u32 0, 2048
    %v122 = vmul.u32 %v117, 128
    %v123 = vmul.u32 %v118, 128
    %v124 = vstv %s121
    %v125 = vadd.s32 %v124, %v122
    %v126 = vadd.s32 %v124, %v123
    %v127 = vadd.s32 %v125, %v120
    %v128 = vadd.s32 %v126, %v120
    %vm129 = vcmp.lt.s32.totalorder %v127, 2048
    %vm130 = vcmp.lt.s32.totalorder %v128, 2048
    %v131 = vsel %vm129, %v114, 0.0
    %v132 = vsel %vm130, %v115, 0.0
    %v133 = vld [vmem:[#allocation2] sm:$0xff]
    %v134 = vadd.f32 %v131, %v132
    %v135 = vadd.f32 %v133, %v134
    %136 = vst [vmem:[#allocation2] sm:$0xff] %v135
    // Predicated region
    $region30: #{tpu_custom_call.1} parent=1 // pred_check
      %p137 = pneg %p54
    $region31: #{tpu_custom_call.1} parent=1 // pred_check_branch
      %139 = sbr.rel (%p137) target = $region33
    $region32: #{tpu_custom_call.1} parent=1 // pred_region
      %v140 = vld [vmem:[#allocation2] sm:$0xff]
      %141 = vadd.xlane.f32.xlu0 %v140
      %v142 = vpop.xlane.xlu0 %141
      %v143 = vrot.slane %v142, 4
      %v144 = vadd.f32 %v142, %v143
      %v145 = vrot.slane %v144, 2
      %v146 = vadd.f32 %v144, %v145
      %v147 = vrot.slane %v146, 1
      %v148 = vadd.f32 %v146, %v147
      %s149 = vtos %v148
      %v150 = vstv %s149
      %v151 = vrcp.pop 2048.0
      %v152 = vmul.f32 %v150, %v151
      %vm153 = vcmask 0
      %154 = vst.msk [vmem:[#allocation10] sm:$0x1] %vm153, %v152
    $region33: #{tpu_custom_call.1} parent=1 // pred_fallthru
      _
    // Predicated region
    $region34: #{tpu_custom_call.1} parent=1 // pred_check
      _
    $region35: #{tpu_custom_call.1} parent=1 // pred_check_branch
      %156 = sbr.rel (0) target = $region37
    $region36: #{tpu_custom_call.1} parent=1 // pred_region
      %s158 = ssub.s32 16, 16
      %159 = vsyncadd [#allocation5], %s158
      %s161 = sshll.u32 [#allocation10], 4
      %s162 = int_to_ptr.vmem [resolvable:$true] %s161
      %164 = dma.vmem_to_hbm [thread:$0]  %s162, 16, %s3, [#allocation5]
    $region37: #{tpu_custom_call.1} parent=1 // pred_fallthru
      _
    // Predicated region
    $region38: #{tpu_custom_call.1} parent=1 // pred_check
      _
    $region39: #{tpu_custom_call.1} parent=1 // pred_check_branch
      %166 = sbr.rel (0) target = $region41
    $region40: #{tpu_custom_call.1} parent=1 // pred_region
      %167 = dma.done [#allocation5], 16
    $region41: #{tpu_custom_call.1} parent=1 // pred_fallthru
      _
    %168 = vsyncpa [#allocation4], 1
    %169 = vsyncpa [#allocation9], 1
    %170 = vsyncpa [#allocation5], 1
    %171 = vsyncpa [#allocation6], 1

</llo_original>
